<compile_context>
chip_gen: v6e
topology: v6e:2x2x1
jax: 0.10.0
libtpu: 0.0.40
codegen_flags: <defaults>
</compile_context>

<pallas_src>
import functools

import numpy as np
import jax
import jax.numpy as jnp
from jax.experimental import pallas as pl
from jax.experimental.pallas import tpu as pltpu


# ---------------------------------------------------------------- encodings
def build_pos_enc(max_len: int, d_model: int) -> jnp.ndarray:
    """Sinusoidal table, identical math to the PyTorch build_pos_enc."""
    position = jnp.arange(max_len, dtype=jnp.float32)[:, None]                 # [L,1]
    div_term = jnp.exp(
        jnp.arange(0, d_model, 2, dtype=jnp.float32) * (-np.log(10000.0) / d_model)
    )                                                                          # [D/2]
    pe = jnp.zeros((max_len, d_model), jnp.float32)
    pe = pe.at[:, 0::2].set(jnp.sin(position * div_term))
    pe = pe.at[:, 1::2].set(jnp.cos(position * div_term))
    return pe[:, None, :]                                                      # [L,1,D]


# ------------------------------------------------------------------ kernels
def _add_kernel(x_ref, enc_ref, o_ref, *, batch, d):
    # x_ref: (tS, B*D) lane-merged rows; enc_ref: (tS, D) per-S-row encoding.
    # Per-batch-slab add + store: pure streaming VPU add, no lane concatenate,
    # live working set stays at one (tS, D) slab.
    enc = enc_ref[...]
    for b in range(batch):                                  # static unroll, B is small
        sl = slice(b * d, (b + 1) * d)
        o_ref[:, sl] = (x_ref[:, sl] + enc).astype(o_ref.dtype)


def _fc_kernel(x_ref, enc_ref, w_ref, o_ref, *, batch, d):
    # x_ref: (tS, B*D); enc_ref: (tS, D) = pe@Wpe^T (+ ae@Wae^T) + bias; w_ref: (D, D) = Wx^T.
    # Each batch slab is matmul'ed, biased and stored directly (no concatenate, no
    # full (tS, B*D) f32 temporary -> no VMEM spills on the store-limited path).
    w = w_ref[...]
    enc = enc_ref[...]
    for b in range(batch):                                  # static unroll, B is small
        sl = slice(b * d, (b + 1) * d)
        acc = jnp.dot(x_ref[:, sl], w, preferred_element_type=jnp.float32) + enc
        o_ref[:, sl] = acc.astype(o_ref.dtype)


# ------------------------------------------------------------- tile sizing
def _round_up(v, m):
    return ((v + m - 1) // m) * m


def _tpu_generation():
    try:
        kind = jax.devices()[0].device_kind.lower()
    except Exception:
        kind = ""
    if "v7" in kind:
        return "v7x"
    if "v6" in kind:
        return "v6e"
    if "v5" in kind:
        return "v5e"
    return "unknown"


def _choose_ts(S, B, D, x_itemsize, *, gen, has_w, w_itemsize):
    """Pick the S-tile size and the VMEM limit, generation-aware.

    v5e/v6e: single TensorCore -> one maximal tile (grid splitting is pure per-step
    overhead); big block budget, 128 MiB physical VMEM.
    v7x/unknown: 2-way grid so both TensorCores (megacore) get work; smaller budget
    because physical VMEM is only 64 MiB (scoped default 32 MiB).
    """
    lane_x = _round_up(B * D, 128)          # padded lane width of x / out blocks
    lane_e = _round_up(D, 128)              # padded lane width of the enc block

    if gen == "v6e":
        budget, target_grid, vmem_limit = 28 << 20, 1, 96 << 20
    elif gen == "v5e":
        budget, target_grid, vmem_limit = 24 << 20, 1, 64 << 20
    else:  # v7x or unknown: conservative, safe on every generation
        budget, target_grid, vmem_limit = 12 << 20, 2, 48 << 20

    if has_w:
        # Resident Wx^T block (constant index_map, but budget it double-buffered).
        budget -= 2 * lane_e * lane_e * w_itemsize
        budget = max(budget, 1 << 20)

    # Per-S-row bytes: x + out double-buffered at x dtype, enc double-buffered at f32.
    bytes_per_row = 2 * 2 * lane_x * x_itemsize + 2 * lane_e * 4
    ts_vmem = max(8, (budget // bytes_per_row) // 8 * 8)
    ts_grid = max(8, _round_up(pl.cdiv(S, target_grid), 8))
    ts = min(ts_vmem, ts_grid, _round_up(S, 8))
    return int(max(8, ts)), int(vmem_limit)


# --------------------------------------------------------------- dispatcher
def _pallas_forward(x, enc, w_x_t, *, concat, ts_override=None):
    S, B, D = x.shape
    dt = x.dtype
    # Free view: merges the two trailing contiguous dims. Lane dim = B*D = full
    # trailing dim, so the BlockSpec is legal for any B*D (dense when B*D % 128 == 0).
    x_wide = x.reshape(S, B * D)
    enc = enc.astype(jnp.float32)

    w_itemsize = 4
    if concat:
        if dt == jnp.bfloat16:
            w_x_t = w_x_t.astype(jnp.bfloat16)      # MXU is bf16-native; f32 accumulation kept
        w_itemsize = int(np.dtype(w_x_t.dtype).itemsize)

    gen = _tpu_generation()
    ts, vmem_limit = _choose_ts(S, B, D, int(np.dtype(dt).itemsize),
                                gen=gen, has_w=concat, w_itemsize=w_itemsize)
    if ts_override is not None:
        ts = max(8, min(_round_up(int(ts_override), 8), _round_up(S, 8)))

    # No jnp.pad of x: ragged S is handled by a cdiv grid; the partial last block is
    # padded on load / masked on store by the Pallas pipeline (no extra HBM copy).
    grid = (pl.cdiv(S, ts),)
    x_spec = pl.BlockSpec((ts, B * D), lambda i: (i, 0))
    enc_spec = pl.BlockSpec((ts, D), lambda i: (i, 0))
    out_spec = pl.BlockSpec((ts, B * D), lambda i: (i, 0))
    cparams = pltpu.CompilerParams(
        dimension_semantics=("parallel",),
        vmem_limit_bytes=vmem_limit,
    )

    if concat:
        kernel = functools.partial(_fc_kernel, batch=B, d=D)
        w_spec = pl.BlockSpec((D, D), lambda i: (0, 0))     # resident, fetched once
        out = pl.pallas_call(
            kernel,
            out_shape=jax.ShapeDtypeStruct((S, B * D), dt),
            grid=grid,
            in_specs=[x_spec, enc_spec, w_spec],
            out_specs=out_spec,
            compiler_params=cparams,
        )(x_wide, enc, w_x_t)
    else:
        kernel = functools.partial(_add_kernel, batch=B, d=D)
        out = pl.pallas_call(
            kernel,
            out_shape=jax.ShapeDtypeStruct((S, B * D), dt),
            grid=grid,
            in_specs=[x_spec, enc_spec],
            out_specs=out_spec,
            compiler_params=cparams,
        )(x_wide, enc)

    return out.reshape(S, B, D)


# ------------------------------------------------------------------- module
class PositionalAgentEncodingPallas:
    def __init__(self, d_model, dropout=0.1, max_t_len=200, max_a_len=200,
                 concat=False, use_agent_enc=False, agent_enc_learn=False,
                 key=jax.random.PRNGKey(0)):
        self.d_model = d_model
        self.concat = concat
        self.use_agent_enc = use_agent_enc
        # TODO(synk): nn.Dropout(p=dropout) is identity at inference; no RNG dropout here.
        self.pe = build_pos_enc(max_t_len, d_model)                            # [T,1,D]
        self.ae = None
        if use_agent_enc:
            if agent_enc_learn:
                key, sub = jax.random.split(key)
                self.ae = 0.1 * jax.random.normal(sub, (max_a_len, 1, d_model),
                                                  jnp.float32)
            else:
                self.ae = build_pos_enc(max_a_len, d_model)                    # [A,1,D]
        self.fc_w = self.fc_b = None
        self.w_x_t = self.w_pe_t = self.w_ae_t = None
        if concat:
            in_dim = (3 if use_agent_enc else 2) * d_model
            key, k1, k2 = jax.random.split(key, 3)
            bound = 1.0 / np.sqrt(in_dim)
            # PyTorch nn.Linear layout: weight [out, in], bias [out]
            self.fc_w = jax.random.uniform(k1, (d_model, in_dim), jnp.float32,
                                           -bound, bound)
            self.fc_b = jax.random.uniform(k2, (d_model,), jnp.float32,
                                           -bound, bound)
            # Split + transpose the Linear weight once at init (no per-call fc_w.T):
            # Linear(concat([x, pe, ae])) == x@Wx^T + pe@Wpe^T + ae@Wae^T + b.
            D = d_model
            self.w_x_t = jnp.asarray(self.fc_w[:, :D].T)                       # [D,D]
            self.w_pe_t = jnp.asarray(self.fc_w[:, D:2 * D].T)                 # [D,D]
            if use_agent_enc:
                self.w_ae_t = jnp.asarray(self.fc_w[:, 2 * D:3 * D].T)         # [D,D]

    # ---- encoding rows (tiny [S, D] glue, plain JAX) ----
    def _pe_rows(self, num_t, num_a, t_offset):
        pe = self.pe[t_offset:t_offset + num_t, 0, :]                          # [T,D]
        return jnp.repeat(pe, num_a, axis=0)                                   # [S,D]

    def _ae_rows(self, num_t, num_a, a_offset, agent_enc_shuffle):
        if agent_enc_shuffle is None:
            ae = self.ae[a_offset:a_offset + num_a, 0, :]                      # [A,D]
        else:
            ae = self.ae[agent_enc_shuffle, 0, :]                              # [A,D]
        return jnp.tile(ae, (num_t, 1))                                        # [S,D]

    # ---- forward ----
    def __call__(self, x, num_a, agent_enc_shuffle=None, t_offset=0, a_offset=0,
                 ts_override=None):
        S, B, D = x.shape
        num_t = S // num_a
        pe_rows = self._pe_rows(num_t, num_a, t_offset)                        # [S,D]
        ae_rows = None
        if self.use_agent_enc:
            ae_rows = self._ae_rows(num_t, num_a, a_offset, agent_enc_shuffle)
        if self.concat:
            # FC split: fold the encoding halves of the Linear plus the bias into a
            # per-S-row bias computed ONCE here; the kernel only does x @ Wx^T.
            enc = pe_rows @ self.w_pe_t + self.fc_b
            if self.use_agent_enc:
                enc = enc + ae_rows @ self.w_ae_t
            return _pallas_forward(x, enc, self.w_x_t, concat=True,
                                   ts_override=ts_override)
        enc = pe_rows if ae_rows is None else pe_rows + ae_rows
        return _pallas_forward(x, enc, None, concat=False, ts_override=ts_override)

    # ---- pure-JAX reference (mirrors the PyTorch forward exactly) ----
    def reference(self, x, num_a, agent_enc_shuffle=None, t_offset=0, a_offset=0):
        S, B, D = x.shape
        num_t = S // num_a
        pos_enc = self._pe_rows(num_t, num_a, t_offset)[:, None, :]            # [S,1,D]
        if self.use_agent_enc:
            agent_enc = self._ae_rows(num_t, num_a, a_offset,
                                      agent_enc_shuffle)[:, None, :]           # [S,1,D]
        if self.concat:
            feat = [x, jnp.broadcast_to(pos_enc, (S, B, D))]
            if self.use_agent_enc:
                feat.append(jnp.broadcast_to(agent_enc, (S, B, D)))
            xc = jnp.concatenate(feat, axis=-1)
            return xc @ self.fc_w.T + self.fc_b
        out = x + pos_enc
        if self.use_agent_enc:
            out = out + agent_enc
        return out


# --------------------------------------------------------------------- main
if __name__ == "__main__":
    d_model = 32
    num_a = 4
    num_t = 4
    B = 2
    S = num_t * num_a                                                          # 16

    key = jax.random.PRNGKey(0)
    kx, kmod, kshuf, kx2 = jax.random.split(key, 4)
    x = jax.random.normal(kx, (S, B, d_model), jnp.float32)

    # Variant 1: concat=True, use_agent_enc=True  (split-FC MXU path, K=d_model)
    mod_cat = PositionalAgentEncodingPallas(
        d_model, max_t_len=16, max_a_len=8, concat=True, use_agent_enc=True,
        agent_enc_learn=False, key=kmod)
    out_cat = jax.block_until_ready(mod_cat(x, num_a))
    ref_cat = mod_cat.reference(x, num_a)
    np.testing.assert_allclose(np.asarray(out_cat), np.asarray(ref_cat),
                               rtol=5e-5, atol=5e-5)

    # Variant 2: default config (concat=False, use_agent_enc=False) -> x + pos_enc
    mod_add = PositionalAgentEncodingPallas(d_model, max_t_len=16, key=kmod)
    out_add = jax.block_until_ready(mod_add(x, num_a, t_offset=2))
    ref_add = mod_add.reference(x, num_a, t_offset=2)
    np.testing.assert_allclose(np.asarray(out_add), np.asarray(ref_add),
                               rtol=1e-6, atol=1e-6)

    # Variant 3: concat=False, learned agent encoding with a shuffle index
    mod_ag = PositionalAgentEncodingPallas(
        d_model, max_t_len=16, max_a_len=8, use_agent_enc=True,
        agent_enc_learn=True, key=kmod)
    shuf = jax.random.permutation(kshuf, num_a)
    out_ag = jax.block_until_ready(mod_ag(x, num_a, agent_enc_shuffle=shuf))
    ref_ag = mod_ag.reference(x, num_a, agent_enc_shuffle=shuf)
    np.testing.assert_allclose(np.asarray(out_ag), np.asarray(ref_ag),
                               rtol=1e-6, atol=1e-6)

    # Variants 4/5: ragged grid (S=24, forced ts=16 -> grid=2 with a masked partial
    # last block) exercising the no-pad path for both the add and the FC kernels.
    num_t2 = 6
    S2 = num_t2 * num_a                                                        # 24
    x2 = jax.random.normal(kx2, (S2, B, d_model), jnp.float32)

    out_r_add = jax.block_until_ready(mod_add(x2, num_a, ts_override=16))
    ref_r_add = mod_add.reference(x2, num_a)
    np.testing.assert_allclose(np.asarray(out_r_add), np.asarray(ref_r_add),
                               rtol=1e-6, atol=1e-6)

    out_r_cat = jax.block_until_ready(mod_cat(x2, num_a, ts_override=16))
    ref_r_cat = mod_cat.reference(x2, num_a)
    np.testing.assert_allclose(np.asarray(out_r_cat), np.asarray(ref_r_cat),
                               rtol=5e-5, atol=5e-5)

    print("KERNEL_OK")
</pallas_src>

<mosaic_0001>
module attributes {stable_mosaic.version = 11 : i64} {
  func.func @_fc_kernel(%arg0: i32, %arg1: memref<8x64xf32, #tpu.memory_space<vmem>>, %arg2: memref<8x32xf32, #tpu.memory_space<vmem>>, %arg3: memref<32x32xf32, #tpu.memory_space<vmem>>, %arg4: memref<8x64xf32, #tpu.memory_space<vmem>>) attributes {dimension_semantics = [#tpu.dimension_semantics<parallel>], iteration_bounds = array<i64: 2>, scalar_prefetch = 0 : i64, scratch_operands = 0 : i64, tpu.core_type = #tpu.core_type<tc>, window_params = [{transform_indices = @transform_0, window_bounds = array<i64: 8, 64>}, {transform_indices = @transform_1, window_bounds = array<i64: 8, 32>}, {pipeline_mode = #tpu.pipeline_mode<synchronous>, transform_indices = @transform_2, window_bounds = array<i64: 32, 32>}, {transform_indices = @transform_3, window_bounds = array<i64: 8, 64>}]} {
    %c0 = arith.constant 0 : index
    %c0_0 = arith.constant 0 : index
    %0 = vector.load %arg3[%c0, %c0_0] : memref<32x32xf32, #tpu.memory_space<vmem>>, vector<32x32xf32>
    %c0_1 = arith.constant 0 : index
    %c0_2 = arith.constant 0 : index
    %1 = vector.load %arg2[%c0_1, %c0_2] : memref<8x32xf32, #tpu.memory_space<vmem>>, vector<8x32xf32>
    %c0_3 = arith.constant 0 : index
    %c0_4 = arith.constant 0 : index
    %2 = vector.load %arg1[%c0_3, %c0_4] : memref<8x64xf32, #tpu.memory_space<vmem>>, vector<8x32xf32>
    %cst = arith.constant dense<0.000000e+00> : vector<8x32xf32>
    %3 = tpu.matmul %2, %0, %cst {dimension_numbers = #tpu.dot_dimension_numbers<[1], [0], [0], [1], [0, 0, 1, 1], [], []>} : vector<8x32xf32>, vector<32x32xf32>, vector<8x32xf32> -> vector<8x32xf32>
    %4 = arith.addf %3, %1 : vector<8x32xf32>
    %c0_5 = arith.constant 0 : index
    %c0_6 = arith.constant 0 : index
    %5 = vector.load %arg4[%c0_5, %c0_6] : memref<8x64xf32, #tpu.memory_space<vmem>>, vector<8x32xf32>
    tpu.vector_store %arg4[%c0_5, %c0_6], %4 {strides = array<i32>} : memref<8x64xf32, #tpu.memory_space<vmem>>, vector<8x32xf32>,
    %c0_7 = arith.constant 0 : index
    %c32 = arith.constant 32 : index
    %6 = vector.load %arg1[%c0_7, %c32] : memref<8x64xf32, #tpu.memory_space<vmem>>, vector<8x32xf32>
    %cst_8 = arith.constant dense<0.000000e+00> : vector<8x32xf32>
    %7 = tpu.matmul %6, %0, %cst_8 {dimension_numbers = #tpu.dot_dimension_numbers<[1], [0], [0], [1], [0, 0, 1, 1], [], []>} : vector<8x32xf32>, vector<32x32xf32>, vector<8x32xf32> -> vector<8x32xf32>
    %8 = arith.addf %7, %1 : vector<8x32xf32>
    %c0_9 = arith.constant 0 : index
    %c32_10 = arith.constant 32 : index
    %9 = vector.load %arg4[%c0_9, %c32_10] : memref<8x64xf32, #tpu.memory_space<vmem>>, vector<8x32xf32>
    tpu.vector_store %arg4[%c0_9, %c32_10], %8 {strides = array<i32>} : memref<8x64xf32, #tpu.memory_space<vmem>>, vector<8x32xf32>,
    return
  }
  func.func @transform_0(%arg0: i32) -> (i32, i32) {
    %c0_i32 = arith.constant 0 : i32
    %c0_i32_0 = arith.constant 0 : i32
    return %arg0, %c0_i32 : i32, i32
  }
  func.func @transform_1(%arg0: i32) -> (i32, i32) {
    %c0_i32 = arith.constant 0 : i32
    %c0_i32_0 = arith.constant 0 : i32
    return %arg0, %c0_i32 : i32, i32
  }
  func.func @transform_2(%arg0: i32) -> (i32, i32) {
    %c0_i32 = arith.constant 0 : i32
    %c0_i32_0 = arith.constant 0 : i32
    %c0_i32_1 = arith.constant 0 : i32
    return %c0_i32, %c0_i32_0 : i32, i32
  }
  func.func @transform_3(%arg0: i32) -> (i32, i32) {
    %c0_i32 = arith.constant 0 : i32
    %c0_i32_0 = arith.constant 0 : i32
    return %arg0, %c0_i32 : i32, i32
  }
}

</mosaic_0001>

<llo_original>
// kernel: tpu_custom_call.1
$region0: #{tpu_custom_call.1}
  #allocation0 [shape = 'u32[]', space=smem, size = 0x4, offset = 0x4, fixed_abs, tag = 'smem constant byte address 0x4 - core index']
  #allocation1 [shape = 'u32[144,128]{1,0:T(1,128)}', space=vmem, size = 0x12000, scoped, tag = 'internal scratch']
  %s0 = inlined_call_operand.hbm [shape: f32[16,64], index: 0, kind: input, shape index: {}]
  %s1 = inlined_call_operand.hbm [shape: f32[16,32], index: 1, kind: input, shape index: {}]
  %s2 = inlined_call_operand.hbm [shape: f32[32,32], index: 2, kind: input, shape index: {}]
  %s3 = inlined_call_operand.hbm [shape: f32[16,64], index: 3, kind: output, shape index: {}]
  %s4 = sld [smem:[#allocation0]]
  $region57: #{tpu_custom_call.1} parent=0
    _
  %s6 = ssub.s32 1, %s4
  %s7 = scalar_select 0, %s6, %s4
  $region1: #{tpu_custom_call.1} parent=0
    #allocation2 [shape = 'u8[8192]{0}', space=vmem, size = 0x2000, scoped, tag = 'input window, operand 0']
    #allocation3 [shape = 's32[2]{0}', space=sflag, size = 0x8, scoped, tag = 'scoped memory for tpu_custom_call.1']
    #allocation4 [shape = 's32[2]{0}', space=sflag, size = 0x8, scoped, tag = 'scoped memory for tpu_custom_call.1']
    #allocation5 [shape = 'u8[8192]{0}', space=vmem, size = 0x2000, scoped, tag = 'input window, operand 1']
    #allocation6 [shape = 's32[2]{0}', space=sflag, size = 0x8, scoped, tag = 'scoped memory for tpu_custom_call.1']
    #allocation7 [shape = 'u8[16384]{0}', space=vmem, size = 0x4000, scoped, tag = 'input window, operand 2, single buffered']
    #allocation8 [shape = 'u8[8192]{0}', space=vmem, size = 0x2000, scoped, tag = 'output window, operand 0']
    %8 = vsyncpa [#allocation3], 0
    %s9 = scalar_lea.sflag [#allocation3], 1
    %10 = vsyncpa %s9, 0
    %11 = vsyncpa [#allocation6], 0
    %s12 = scalar_lea.sflag [#allocation6], 1
    %13 = vsyncpa %s12, 0
    %14 = vsyncpa [#allocation4], 0
    %s15 = scalar_lea.sflag [#allocation4], 1
    %16 = vsyncpa %s15, 0
    loop: start=0, step=1, limit=4
    $region2: #{tpu_custom_call.1} parent=1 // loop_pre_header
      _
    $region3: #{tpu_custom_call.1} parent=1 // loop_header
      %s18 = sphi 0, %s22
      %p19 = scmp.ge.s32.totalorder %s18, 4
      %s28 = sphi 0, %s30
      %s31 = sphi 0, %s28
      %s32 = sphi 0, %s31
      %s48 = sphi 0, %s32
      %s54 = sphi 0, %s56
      %s57 = sphi 0, %s54
      %s58 = sphi 0, %s57
      %s74 = sphi 0, %s58
      %s78 = sphi 0, %s78
      %s80 = sphi 0, %s78
      %s81 = sphi 0, %s80
      %s95 = sphi 0, %s81
      %s101 = sphi 0, %s103
      %s104 = sphi 0, %s101
      %s105 = sphi 0, %s104
      %s121 = sphi 0, %s105
    $region4: #{tpu_custom_call.1} parent=1 // loop_header_branch
      %21 = sbr.rel (%p19) target = $region8
    $region5: #{tpu_custom_call.1} parent=1 // loop_body
      %s23 = ssub.s32 %s18, 1
      %s24 = ssub.s32 %s18, 2
      %s25 = sadd.s32 %s18, 1
      %s26 = ssub.s32 %s18, %s25
      %p27 = scmp.eq.s32.totalorder %s26, 0
      %s29 = sadd.s32 %s28, 1
      %s30 = scalar_select %p27, %s28, %s29
      %p33 = pneg %p27
      %p34 = scmp.eq.s32.totalorder %s18, 1
      %p35 = por %p33, %p34
      %p36 = scmp.ne.s32.totalorder %s28, %s31
      %p37 = scmp.eq.s32.totalorder %s18, 0
      %p38 = por %p36, %p37
      %p39 = scmp.ne.s32.totalorder %s28, %s31
      %p40 = scmp.eq.s32.totalorder %s23, 1
      %p41 = por %p39, %p40
      %p42 = scmp.ne.s32.totalorder %s31, %s32
      %p43 = scmp.eq.s32.totalorder %s23, 0
      %p44 = por %p42, %p43
      %p45 = scmp.ne.s32.totalorder %s31, %s32
      %p46 = scmp.eq.s32.totalorder %s24, 1
      %p47 = por %p45, %p46
      %p49 = scmp.ne.s32.totalorder %s32, %s48
      %p50 = scmp.eq.s32.totalorder %s24, 0
      %p51 = por %p49, %p50
      %s52 = ssub.s32 %s18, %s25
      %p53 = scmp.eq.s32.totalorder %s52, 0
      %s55 = sadd.s32 %s54, 1
      %s56 = scalar_select %p53, %s54, %s55
      %p59 = pneg %p53
      %p60 = scmp.eq.s32.totalorder %s18, 1
      %p61 = por %p59, %p60
      %p62 = scmp.ne.s32.totalorder %s54, %s57
      %p63 = scmp.eq.s32.totalorder %s18, 0
      %p64 = por %p62, %p63
      %p65 = scmp.ne.s32.totalorder %s54, %s57
      %p66 = scmp.eq.s32.totalorder %s23, 1
      %p67 = por %p65, %p66
      %p68 = scmp.ne.s32.totalorder %s57, %s58
      %p69 = scmp.eq.s32.totalorder %s23, 0
      %p70 = por %p68, %p69
      %p71 = scmp.ne.s32.totalorder %s57, %s58
      %p72 = scmp.eq.s32.totalorder %s24, 1
      %p73 = por %p71, %p72
      %p75 = scmp.ne.s32.totalorder %s58, %s74
      %p76 = scmp.eq.s32.totalorder %s24, 0
      %p77 = por %p75, %p76
      %s79 = sadd.s32 %s78, 1
      %p82 = scmp.eq.s32.totalorder %s18, 1
      %p83 = scmp.ne.s32.totalorder %s78, %s80
      %p84 = scmp.eq.s32.totalorder %s18, 0
      %p85 = por %p83, %p84
      %p86 = scmp.ne.s32.totalorder %s78, %s80
      %p87 = scmp.eq.s32.totalorder %s23, 1
      %p88 = por %p86, %p87
      %p89 = scmp.ne.s32.totalorder %s80, %s81
      %p90 = scmp.eq.s32.totalorder %s23, 0
      %p91 = por %p89, %p90
      %p92 = scmp.ne.s32.totalorder %s80, %s81
      %p93 = scmp.eq.s32.totalorder %s24, 1
      %p94 = por %p92, %p93
      %p96 = scmp.ne.s32.totalorder %s81, %s95
      %p97 = scmp.eq.s32.totalorder %s24, 0
      %p98 = por %p96, %p97
      %s99 = ssub.s32 %s18, %s25
      %p100 = scmp.eq.s32.totalorder %s99, 0
      %s102 = sadd.s32 %s101, 1
      %s103 = scalar_select %p100, %s101, %s102
      %p106 = pneg %p100
      %p107 = scmp.eq.s32.totalorder %s18, 1
      %p108 = por %p106, %p107
      %p109 = scmp.ne.s32.totalorder %s101, %s104
      %p110 = scmp.eq.s32.totalorder %s18, 0
      %p111 = por %p109, %p110
      %p112 = scmp.ne.s32.totalorder %s101, %s104
      %p113 = scmp.eq.s32.totalorder %s23, 1
      %p114 = por %p112, %p113
      %p115 = scmp.ne.s32.totalorder %s104, %s105
      %p116 = scmp.eq.s32.totalorder %s23, 0
      %p117 = por %p115, %p116
      %p118 = scmp.ne.s32.totalorder %s104, %s105
      %p119 = scmp.eq.s32.totalorder %s24, 1
      %p120 = por %p118, %p119
      %p122 = scmp.ne.s32.totalorder %s105, %s121
      %p123 = scmp.eq.s32.totalorder %s24, 0
      %p124 = por %p122, %p123
      %p125 = scmp.le.s32.totalorder 1, %s18
      %p126 = scmp.lt.s32.totalorder %s18, 3
      %p127 = pnand %p125, %p126
      %p128 = pneg %p127
      // Predicated region
      $region9: #{tpu_custom_call.1} parent=5 // pred_check
        _
      $region10: #{tpu_custom_call.1} parent=5 // pred_check_branch
        %130 = sbr.rel (%p127) target = $region12
      $region11: #{tpu_custom_call.1} parent=5 // pred_region
        %s131 = ssub.s32 %s18, 1
        // Predicated region
        $region13: #{tpu_custom_call.1} parent=11 // pred_check
          %p132 = pneg %p91
        $region14: #{tpu_custom_call.1} parent=11 // pred_check_branch
          %134 = sbr.rel (%p132) target = $region16
        $region15: #{tpu_custom_call.1} parent=11 // pred_region
          %s136 = ssub.s32 512, 512
          %137 = vsyncadd [#allocation6], %s136
          %s138 = sshll.u32 [#allocation7], 4
          %s139 = int_to_ptr.vmem [resolvable:$true] %s138
          %144 = dma.hbm_to_vmem [thread:$0]  %s2, 512, %s139, [#allocation6], 128, 128, 8
        $region16: #{tpu_custom_call.1} parent=11 // pred_fallthru
          _
      $region12: #{tpu_custom_call.1} parent=5 // pred_fallthru
        _
      %p145 = scmp.lt.s32.totalorder %s18, 2
      // Predicated region
      $region17: #{tpu_custom_call.1} parent=5 // pred_check
        %p146 = pneg %p145
      $region18: #{tpu_custom_call.1} parent=5 // pred_check_branch
        %148 = sbr.rel (%p146) target = $region20
      $region19: #{tpu_custom_call.1} parent=5 // pred_region
        // Predicated region
        $region21: #{tpu_custom_call.1} parent=19 // pred_check
          %p149 = pneg %p38
        $region22: #{tpu_custom_call.1} parent=19 // pred_check_branch
          %151 = sbr.rel (%p149) target = $region24
        $region23: #{tpu_custom_call.1} parent=19 // pred_region
          %s152 = sand.u32 %s28, 1
          %s153 = scalar_lea.sflag [#allocation3], %s152
          %s154 = sand.u32 %s28, 1
          %s155 = smul.addr %s154, 8
          %s156 = scalar_lea.vmem [#allocation2], %s155
          %s158 = ssub.s32 128, 128
          %159 = vsyncadd %s153, %s158
          %s160 = smul.addr %s18, 128
          %s161 = scalar_lea.hbm %s0, %s160
          %s163 = sshll.u32 %s156, 4
          %s164 = int_to_ptr.vmem [resolvable:$true] %s163
          %166 = dma.hbm_to_vmem [thread:$0]  %s161, 128, %s164, %s153
        $region24: #{tpu_custom_call.1} parent=19 // pred_fallthru
          _
        // Predicated region
        $region25: #{tpu_custom_call.1} parent=19 // pred_check
          %p167 = pneg %p64
        $region26: #{tpu_custom_call.1} parent=19 // pred_check_branch
          %169 = sbr.rel (%p167) target = $region28
        $region27: #{tpu_custom_call.1} parent=19 // pred_region
          %s170 = sand.u32 %s18, 1
          %s171 = scalar_lea.sflag [#allocation6], %s170
          %s172 = sand.u32 %s54, 1
          %s173 = smul.addr %s172, 8
          %s174 = scalar_lea.vmem [#allocation5], %s173
          %s176 = ssub.s32 128, 128
          %177 = vsyncadd %s171, %s176
          %s178 = smul.addr %s18, 128
          %s179 = scalar_lea.hbm %s1, %s178
          %s181 = sshll.u32 %s174, 4
          %s182 = int_to_ptr.vmem [resolvable:$true] %s181
          %184 = dma.hbm_to_vmem [thread:$0]  %s179, 128, %s182, %s171
        $region28: #{tpu_custom_call.1} parent=19 // pred_fallthru
          _
      $region20: #{tpu_custom_call.1} parent=5 // pred_fallthru
        _
      %p185 = scmp.le.s32.totalorder 1, %s18
      %p186 = scmp.lt.s32.totalorder %s18, 3
      %p187 = pnand %p185, %p186
      %p188 = pneg %p187
      // Predicated region
      $region29: #{tpu_custom_call.1} parent=5 // pred_check
        _
      $region30: #{tpu_custom_call.1} parent=5 // pred_check_branch
        %190 = sbr.rel (%p187) target = $region32
      $region31: #{tpu_custom_call.1} parent=5 // pred_region
        %s191 = ssub.s32 %s18, 1
        %s192 = sand.u32 %s31, 1
        %s193 = scalar_lea.sflag [#allocation3], %s192
        %s194 = sand.u32 %s31, 1
        %s195 = smul.addr %s194, 8
        %s196 = scalar_lea.vmem [#allocation2], %s195
        // Predicated region
        $region33: #{tpu_custom_call.1} parent=31 // pred_check
          %p197 = pneg %p44
        $region34: #{tpu_custom_call.1} parent=31 // pred_check_branch
          %199 = sbr.rel (%p197) target = $region36
        $region35: #{tpu_custom_call.1} parent=31 // pred_region
          %200 = dma.done %s193, 128
        $region36: #{tpu_custom_call.1} parent=31 // pred_fallthru
          _
        %s201 = sand.u32 %s23, 1
        %s202 = scalar_lea.sflag [#allocation6], %s201
        %s203 = sand.u32 %s57, 1
        %s204 = smul.addr %s203, 8
        %s205 = scalar_lea.vmem [#allocation5], %s204
        // Predicated region
        $region37: #{tpu_custom_call.1} parent=31 // pred_check
          %p206 = pneg %p70
        $region38: #{tpu_custom_call.1} parent=31 // pred_check_branch
          %208 = sbr.rel (%p206) target = $region40
        $region39: #{tpu_custom_call.1} parent=31 // pred_region
          %209 = dma.done %s202, 128
        $region40: #{tpu_custom_call.1} parent=31 // pred_fallthru
          _
        // Predicated region
        $region41: #{tpu_custom_call.1} parent=31 // pred_check
          %p210 = pneg %p91
        $region42: #{tpu_custom_call.1} parent=31 // pred_check_branch
          %212 = sbr.rel (%p210) target = $region44
        $region43: #{tpu_custom_call.1} parent=31 // pred_region
          %213 = dma.done [#allocation6], 512
        $region44: #{tpu_custom_call.1} parent=31 // pred_fallthru
          _
        %s214 = sand.u32 %s31, 1
        %s215 = scalar_lea.sflag [#allocation3], %s214
        %s216 = sand.u32 %s31, 1
        %s217 = smul.addr %s216, 8
        %s218 = scalar_lea.vmem [#allocation2], %s217
        %p219 = pneg %p44
        %p220 = pneg %p41
        %s221 = sand.u32 %s23, 1
        %s222 = scalar_lea.sflag [#allocation6], %s221
        %s223 = sand.u32 %s57, 1
        %s224 = smul.addr %s223, 8
        %s225 = scalar_lea.vmem [#allocation5], %s224
        %p226 = pneg %p70
        %p227 = pneg %p67
        %p228 = pneg %p91
        %p229 = pneg %p88
        %p230 = pneg %p117
        %p231 = pneg %p114
        %s232 = sand.u32 %s104, 1
        %s233 = scalar_lea.sflag [#allocation4], %s232
        %s234 = sand.u32 %s104, 1
        %s235 = smul.addr %s234, 8
        %s236 = scalar_lea.vmem [#allocation8], %s235
        %v237 = vld [vmem:[#allocation7] sm:$0xff]
        %v238 = vld [vmem:[#allocation7 + $0x8] sm:$0xff]
        %v239 = vld [vmem:[#allocation7 + $0x10] sm:$0xff]
        %v240 = vld [vmem:[#allocation7 + $0x18] sm:$0xff]
        %v241 = vld [vmem:[%s205] sm:$0xff]
        %v242 = vld [vmem:[%s196] sm:$0xff]
        %vm243 = vcmask 261120
        %v245 = vsel %vm243, %v242, 0
        %247 = vmatprep.subr.mxu0 0.0
        %248 = vmatpush1.msra.mxu0 0.0
        %249 = vmatprep.subr.mxu0 0.0
        %250 = vmatpush1.msra.mxu0 0.0
        %251 = vmatprep.subr.mxu0 0.0
        %252 = vmatpush1.msra.mxu0 0.0
        %253 = vmatprep.subr.mxu0 0.0
        %254 = vmatpush1.msra.mxu0 0.0
        %255 = vmatprep.subr.mxu0 0.0
        %256 = vmatpush1.msra.mxu0 0.0
        %257 = vmatprep.subr.mxu0 0.0
        %258 = vmatpush1.msra.mxu0 0.0
        %259 = vmatprep.subr.mxu0 0.0
        %260 = vmatpush1.msra.mxu0 0.0
        %261 = vmatprep.subr.mxu0 0.0
        %262 = vmatpush1.msra.mxu0 0.0
        %263 = vmatprep.subr.mxu0 0.0
        %264 = vmatpush1.msra.mxu0 0.0
        %265 = vmatprep.subr.mxu0 0.0
        %266 = vmatpush1.msra.mxu0 0.0
        %267 = vmatprep.subr.mxu0 0.0
        %268 = vmatpush1.msra.mxu0 0.0
        %269 = vmatprep.subr.mxu0 0.0
        %270 = vmatpush1.msra.mxu0 0.0
        %271 = vmatprep.subr.mxu0 0.0
        %272 = vmatpush1.msra.mxu0 %v240
        %273 = vmatprep.subr.mxu0 0.0
        %274 = vmatpush1.msra.mxu0 %v239
        %275 = vmatprep.subr.mxu0 0.0
        %276 = vmatpush1.msra.mxu0 %v238
        %277 = vmatprep.subr.mxu0 0.0
        %278 = vmatpush1.msra.mxu0 %v237
        %279 = vmatprep.subr.mxu0 0.0
        %280 = vmatpush2.msra.mxu0 0.0
        %281 = vmatprep.subr.mxu0 0.0
        %282 = vmatpush2.msra.mxu0 0.0
        %283 = vmatprep.subr.mxu0 0.0
        %284 = vmatpush2.msra.mxu0 0.0
        %285 = vmatprep.subr.mxu0 0.0
        %286 = vmatpush2.msra.mxu0 0.0
        %287 = vmatprep.subr.mxu0 0.0
        %288 = vmatpush2.msra.mxu0 0.0
        %289 = vmatprep.subr.mxu0 0.0
        %290 = vmatpush2.msra.mxu0 0.0
        %291 = vmatprep.subr.mxu0 0.0
        %292 = vmatpush2.msra.mxu0 0.0
        %293 = vmatprep.subr.mxu0 0.0
        %294 = vmatpush2.msra.mxu0 0.0
        %295 = vmatprep.subr.mxu0 0.0
        %296 = vmatpush2.msra.mxu0 0.0
        %297 = vmatprep.subr.mxu0 0.0
        %298 = vmatpush2.msra.mxu0 0.0
        %299 = vmatprep.subr.mxu0 0.0
        %300 = vmatpush2.msra.mxu0 0.0
        %301 = vmatprep.subr.mxu0 0.0
        %302 = vmatpush2.msra.mxu0 0.0
        %303 = vmatprep.subr.mxu0 0.0
        %304 = vmatpush2.msra.mxu0 0.0
        %305 = vmatprep.subr.mxu0 0.0
        %306 = vmatpush2.msra.mxu0 0.0
        %307 = vmatprep.subr.mxu0 0.0
        %308 = vmatpush2.msra.mxu0 0.0
        %309 = vmatprep.subr.mxu0 0.0
        %310 = vmatpush2.msra.mxu0 0.0
        %311 = vmatprep.mubr.f32.mxu0 0.0
        %312 = vmatmul.mubr.f32.gmra.mxu0 %v245
        %v313 = vpop.f32.mrf.mxu0
        %v314 = vadd.f32 %v241, %v313
        %v315 = vpop.f32.mrf.mxu0
        %316 = vdwg.mxu0
        %317 = vst.msk [vmem:[%s236] sm:$0xff] %vm243, %v314
        %v318 = vld [vmem:[%s196] sm:$0xff]
        %320 = vrot.lane.b32.xlu0 %v318, 96
        %v321 = vpop.permute.xlu0 %320
        %v322 = vsel %vm243, %v321, 0
        %324 = vmatprep.subr.mxu0 0.0
        %325 = vmatpush1.msra.mxu0 0.0
        %326 = vmatprep.subr.mxu0 0.0
        %327 = vmatpush1.msra.mxu0 0.0
        %328 = vmatprep.subr.mxu0 0.0
        %329 = vmatpush1.msra.mxu0 0.0
        %330 = vmatprep.subr.mxu0 0.0
        %331 = vmatpush1.msra.mxu0 0.0
        %332 = vmatprep.subr.mxu0 0.0
        %333 = vmatpush1.msra.mxu0 0.0
        %334 = vmatprep.subr.mxu0 0.0
        %335 = vmatpush1.msra.mxu0 0.0
        %336 = vmatprep.subr.mxu0 0.0
        %337 = vmatpush1.msra.mxu0 0.0
        %338 = vmatprep.subr.mxu0 0.0
        %339 = vmatpush1.msra.mxu0 0.0
        %340 = vmatprep.subr.mxu0 0.0
        %341 = vmatpush1.msra.mxu0 0.0
        %342 = vmatprep.subr.mxu0 0.0
        %343 = vmatpush1.msra.mxu0 0.0
        %344 = vmatprep.subr.mxu0 0.0
        %345 = vmatpush1.msra.mxu0 0.0
        %346 = vmatprep.subr.mxu0 0.0
        %347 = vmatpush1.msra.mxu0 0.0
        %348 = vmatprep.subr.mxu0 0.0
        %349 = vmatpush1.msra.mxu0 %v240
        %350 = vmatprep.subr.mxu0 0.0
        %351 = vmatpush1.msra.mxu0 %v239
        %352 = vmatprep.subr.mxu0 0.0
        %353 = vmatpush1.msra.mxu0 %v238
        %354 = vmatprep.subr.mxu0 0.0
        %355 = vmatpush1.msra.mxu0 %v237
        %356 = vmatprep.subr.mxu0 0.0
        %357 = vmatpush2.msra.mxu0 0.0
        %358 = vmatprep.subr.mxu0 0.0
        %359 = vmatpush2.msra.mxu0 0.0
        %360 = vmatprep.subr.mxu0 0.0
        %361 = vmatpush2.msra.mxu0 0.0
        %362 = vmatprep.subr.mxu0 0.0
        %363 = vmatpush2.msra.mxu0 0.0
        %364 = vmatprep.subr.mxu0 0.0
        %365 = vmatpush2.msra.mxu0 0.0
        %366 = vmatprep.subr.mxu0 0.0
        %367 = vmatpush2.msra.mxu0 0.0
        %368 = vmatprep.subr.mxu0 0.0
        %369 = vmatpush2.msra.mxu0 0.0
        %370 = vmatprep.subr.mxu0 0.0
        %371 = vmatpush2.msra.mxu0 0.0
        %372 = vmatprep.subr.mxu0 0.0
        %373 = vmatpush2.msra.mxu0 0.0
        %374 = vmatprep.subr.mxu0 0.0
        %375 = vmatpush2.msra.mxu0 0.0
        %376 = vmatprep.subr.mxu0 0.0
        %377 = vmatpush2.msra.mxu0 0.0
        %378 = vmatprep.subr.mxu0 0.0
        %379 = vmatpush2.msra.mxu0 0.0
        %380 = vmatprep.subr.mxu0 0.0
        %381 = vmatpush2.msra.mxu0 0.0
        %382 = vmatprep.subr.mxu0 0.0
        %383 = vmatpush2.msra.mxu0 0.0
        %384 = vmatprep.subr.mxu0 0.0
        %385 = vmatpush2.msra.mxu0 0.0
        %386 = vmatprep.subr.mxu0 0.0
        %387 = vmatpush2.msra.mxu0 0.0
        %388 = vmatprep.mubr.f32.mxu0 0.0
        %389 = vmatmul.mubr.f32.gmra.mxu0 %v322
        %v390 = vpop.f32.mrf.mxu0
        %v391 = vadd.f32 %v241, %v390
        %v392 = vpop.f32.mrf.mxu0
        %393 = vdwg.mxu0
        %395 = vrot.lane.b32.xlu0 %v391, 32
        %v396 = vpop.permute.xlu0 %395
        %vm398 = vcmask 523520
        %399 = vst.msk [vmem:[%s236] sm:$0xff] %vm398, %v396
        %s400 = sand.u32 %s104, 1
        %s401 = scalar_lea.sflag [#allocation4], %s400
        %s402 = sand.u32 %s104, 1
        %s403 = smul.addr %s402, 8
        %s404 = scalar_lea.vmem [#allocation8], %s403
        // Predicated region
        $region45: #{tpu_custom_call.1} parent=31 // pred_check
          %p405 = pneg %p114
        $region46: #{tpu_custom_call.1} parent=31 // pred_check_branch
          %407 = sbr.rel (%p405) target = $region48
        $region47: #{tpu_custom_call.1} parent=31 // pred_region
          %s409 = ssub.s32 128, 128
          %410 = vsyncadd %s401, %s409
          %s411 = smul.addr %s23, 128
          %s412 = scalar_lea.hbm %s3, %s411
          %s414 = sshll.u32 %s404, 4
          %s415 = int_to_ptr.vmem [resolvable:$true] %s414
          %417 = dma.vmem_to_hbm [thread:$0]  %s415, 128, %s412, %s401
        $region48: #{tpu_custom_call.1} parent=31 // pred_fallthru
          _
      $region32: #{tpu_custom_call.1} parent=5 // pred_fallthru
        _
      %p418 = scmp.le.s32.totalorder 2, %s18
      // Predicated region
      $region49: #{tpu_custom_call.1} parent=5 // pred_check
        %p419 = pneg %p418
      $region50: #{tpu_custom_call.1} parent=5 // pred_check_branch
        %421 = sbr.rel (%p419) target = $region52
      $region51: #{tpu_custom_call.1} parent=5 // pred_region
        %s422 = ssub.s32 %s18, 2
        // Predicated region
        $region53: #{tpu_custom_call.1} parent=51 // pred_check
          %p423 = pneg %p120
        $region54: #{tpu_custom_call.1} parent=51 // pred_check_branch
          %425 = sbr.rel (%p423) target = $region56
        $region55: #{tpu_custom_call.1} parent=51 // pred_region
          %s426 = sand.u32 %s105, 1
          %s427 = scalar_lea.sflag [#allocation4], %s426
          %s428 = sand.u32 %s105, 1
          %s429 = smul.addr %s428, 8
          %s430 = scalar_lea.vmem [#allocation8], %s429
          %431 = dma.done %s427, 128
        $region56: #{tpu_custom_call.1} parent=51 // pred_fallthru
          _
      $region52: #{tpu_custom_call.1} parent=5 // pred_fallthru
        _
    $region6: #{tpu_custom_call.1} parent=1 // loop_footer
      %s22 = sadd.s32 1, %s18
    $region7: #{tpu_custom_call.1} parent=1 // loop_footer_branch
      %17 = sbr.rel target = $region3
    $region8: #{tpu_custom_call.1} parent=1 // loop_exit
      _
    %432 = vsyncpa [#allocation3], 1
    %s433 = scalar_lea.sflag [#allocation3], 1
    %434 = vsyncpa %s433, 1
    %435 = vsyncpa [#allocation6], 1
    %s436 = scalar_lea.sflag [#allocation6], 1
    %437 = vsyncpa %s436, 1
    %438 = vsyncpa [#allocation4], 1
    %s439 = scalar_lea.sflag [#allocation4], 1
    %440 = vsyncpa %s439, 1

</llo_original>
